<compile_context>
chip_gen: v6e
topology: v6e:2x2x1
jax: 0.10.0
libtpu: 0.0.40
codegen_flags: <defaults>
</compile_context>

<pallas_src>
import math

import jax
import jax.numpy as jnp
import numpy as np
from jax.experimental import pallas as pl
from jax.experimental.pallas import tpu as pltpu


def _round_up(x: int, m: int) -> int:
    return ((x + m - 1) // m) * m


def _round_down(x: int, m: int) -> int:
    return (x // m) * m


_GATHER_UNROLL = 8  # rows issued/gathered per unrolled group (one sublane group)


def _emb_kernel_vmem(ids_ref, table_ref, pe_ref, out_ref, rows_ref):
    """Fast path: embedding table resident in VMEM, gather via vector loads.

    ids_ref   : SMEM (B*S_pad,) int32      (scalar prefetch, flattened)
    table_ref : VMEM (V, D) f32            (constant index_map -> loaded once)
    pe_ref    : VMEM (tile_s, D) f32       (re-used across the inner batch axis)
    out_ref   : VMEM (tile_s, D) f32       (batch dim squeezed)
    rows_ref  : VMEM (tile_s, D) f32       (gather destination scratch)
    """
    j = pl.program_id(0)                     # seq tile (outer)
    b = pl.program_id(1)                     # batch    (inner)
    tile_s, d = rows_ref.shape
    s_pad = pl.num_programs(0) * tile_s
    base = b * s_pad + j * tile_s

    @pl.loop(0, tile_s // _GATHER_UNROLL)
    def _gather(g):
        t0 = pl.multiple_of(g * _GATHER_UNROLL, _GATHER_UNROLL)
        for u in range(_GATHER_UNROLL):      # static unroll within the group
            t = t0 + u
            tok = ids_ref[base + t]
            rows_ref[pl.ds(t, 1), :] = table_ref[pl.ds(tok, 1), :]

    scale = jnp.float32(math.sqrt(d))
    out_ref[...] = rows_ref[...] * scale + pe_ref[...]


def _emb_kernel_hbm(ids_ref, table_hbm, pe_ref, out_ref, rows_ref, copy_sem):
    """Large-table path: table stays in HBM, per-row DMA gather, single wait.

    table_hbm : HBM (V, D) f32  (memory_space=pl.ANY, raw ref)
    """
    j = pl.program_id(0)
    b = pl.program_id(1)
    tile_s, d = rows_ref.shape
    s_pad = pl.num_programs(0) * tile_s
    base = b * s_pad + j * tile_s

    # Issue one D-wide row DMA per token, unrolled by 8 so scalar loads /
    # address math / descriptor pushes pipeline.  All DMAs share one sem.
    @pl.loop(0, tile_s // _GATHER_UNROLL)
    def _issue(g):
        t0 = pl.multiple_of(g * _GATHER_UNROLL, _GATHER_UNROLL)
        for u in range(_GATHER_UNROLL):
            t = t0 + u
            tok = ids_ref[base + t]
            pltpu.make_async_copy(
                table_hbm.at[pl.ds(tok, 1), :],
                rows_ref.at[pl.ds(t, 1), :],
                copy_sem,
            ).start()

    # Single wait whose descriptor covers the whole (tile_s, D) scratch:
    # same semaphore, same total byte count as the tile_s row copies.
    pltpu.make_async_copy(rows_ref, rows_ref, copy_sem).wait()

    scale = jnp.float32(math.sqrt(d))
    out_ref[...] = rows_ref[...] * scale + pe_ref[...]


def make_sinusoidal_pe(max_seq_len: int, d_model: int) -> jnp.ndarray:
    """Exact reimplementation of the PyTorch buffer construction."""
    pe = np.zeros((max_seq_len, d_model), dtype=np.float32)
    position = np.arange(0, max_seq_len, dtype=np.float32)[:, None]
    div_term = np.exp(
        np.arange(0, d_model, 2, dtype=np.float32) * (-math.log(10000.0) / d_model)
    )
    pe[:, 0::2] = np.sin(position * div_term)
    pe[:, 1::2] = np.cos(position * div_term)
    return jnp.asarray(pe)


def embedding_layer(input_ids: jnp.ndarray,
                    emb_table: jnp.ndarray,
                    pe_table: jnp.ndarray,
                    *,
                    table_in_vmem: bool | None = None,
                    vmem_budget_bytes: int = 24 * 2**20,
                    max_tile_s: int = 512) -> jnp.ndarray:
    """input_ids: (B, S) int32; emb_table: (V, D) f32; pe_table: (>=S, D) f32."""
    B, S = input_ids.shape
    V, D = emb_table.shape
    assert pe_table.shape[0] >= S and pe_table.shape[1] == D

    table_bytes = V * D * 4                     # table is handled in f32
    if table_in_vmem is None:
        # x2: Pallas double-buffers the (constant-index) table block.
        table_in_vmem = 2 * table_bytes <= vmem_budget_bytes // 2

    # tile_s from VMEM budget: per-step streams = 2*PE + 2*out + rows scratch.
    resident = 2 * table_bytes if table_in_vmem else 0
    stream_budget = max(vmem_budget_bytes - resident, 5 * _GATHER_UNROLL * D * 4)
    tile_s = _round_down(stream_budget // (5 * D * 4), _GATHER_UNROLL)
    tile_s = max(_GATHER_UNROLL,
                 min(tile_s, max_tile_s, _round_up(S, _GATHER_UNROLL)))
    tile_s = _round_up(tile_s, _GATHER_UNROLL)

    s_pad = _round_up(S, tile_s)

    # Guard against out-of-range ids (nn.Embedding would raise; we clamp).
    ids = jnp.clip(input_ids.astype(jnp.int32), 0, V - 1)
    if s_pad != S:
        ids = jnp.pad(ids, ((0, 0), (0, s_pad - S)))       # pad positions -> row 0
    ids_flat = ids.reshape(B * s_pad)                        # 1-D SMEM operand

    pe_slice = pe_table[:S].astype(jnp.float32)              # x + pe[:, :S]
    if s_pad != S:
        pe_slice = jnp.pad(pe_slice, ((0, s_pad - S), (0, 0)))

    nj = s_pad // tile_s
    grid = (nj, B)    # batch innermost -> PE block (j, 0) re-used, not re-DMA'd

    vmem_need = resident + 5 * tile_s * D * 4 + (2 << 20)
    vmem_limit = int(min(64 * 2**20, max(32 * 2**20, vmem_need)))

    pe_spec = pl.BlockSpec((tile_s, D), lambda j, b, ids: (j, 0))
    out_spec = pl.BlockSpec((None, tile_s, D), lambda j, b, ids: (b, j, 0))

    if table_in_vmem:
        kernel = _emb_kernel_vmem
        table_spec = pl.BlockSpec((V, D), lambda j, b, ids: (0, 0))   # whole table, once
        scratch = [pltpu.VMEM((tile_s, D), jnp.float32)]
    else:
        kernel = _emb_kernel_hbm
        table_spec = pl.BlockSpec(memory_space=pl.ANY)                # stays in HBM
        scratch = [pltpu.VMEM((tile_s, D), jnp.float32),
                   pltpu.SemaphoreType.DMA(())]

    out = pl.pallas_call(
        kernel,
        out_shape=jax.ShapeDtypeStruct((B, s_pad, D), jnp.float32),
        grid_spec=pltpu.PrefetchScalarGridSpec(
            num_scalar_prefetch=1,                 # ids -> SMEM
            grid=grid,
            in_specs=[table_spec, pe_spec],
            out_specs=out_spec,
            scratch_shapes=scratch,
        ),
        compiler_params=pltpu.CompilerParams(
            dimension_semantics=("parallel", "parallel"),   # megacore sharding
            vmem_limit_bytes=vmem_limit,
        ),
    )(ids_flat, emb_table.astype(jnp.float32), pe_slice)

    if s_pad != S:
        out = out[:, :S, :]
    return out


if __name__ == "__main__":
    # Small, forward-consistent shapes.
    batch_size = 2
    seq_len = 8
    d_model = 128
    vocab_size = 64
    max_seq_len = 16

    key = jax.random.PRNGKey(0)
    k_ids, k_emb = jax.random.split(key)

    input_ids = jax.random.randint(k_ids, (batch_size, seq_len), 0, vocab_size,
                                   dtype=jnp.int32)
    # nn.Embedding default init is N(0, 1); deterministic synthetic weights.
    emb_table = jax.random.normal(k_emb, (vocab_size, d_model), dtype=jnp.float32)
    pe_table = make_sinusoidal_pe(max_seq_len, d_model)

    # Pure-JAX reference (eval-mode dropout == identity).
    ref = emb_table[input_ids] * jnp.sqrt(jnp.float32(d_model)) + pe_table[:seq_len][None]

    # Fast path: table resident in VMEM (auto-selected for this size too).
    out_fast = jax.block_until_ready(
        embedding_layer(input_ids, emb_table, pe_table, table_in_vmem=True))
    np.testing.assert_allclose(np.asarray(out_fast), np.asarray(ref),
                               rtol=1e-5, atol=1e-5)

    # Large-table path: table stays in HBM, per-row DMA gather + single wait.
    out_hbm = jax.block_until_ready(
        embedding_layer(input_ids, emb_table, pe_table, table_in_vmem=False))
    np.testing.assert_allclose(np.asarray(out_hbm), np.asarray(ref),
                               rtol=1e-5, atol=1e-5)

    print("KERNEL_OK")
</pallas_src>

<mosaic_0001>
module attributes {stable_mosaic.version = 11 : i64} {
  func.func @_emb_kernel_vmem(%arg0: i32, %arg1: i32, %arg2: memref<16xi32, #tpu.memory_space<smem>>, %arg3: memref<64x128xf32, #tpu.memory_space<vmem>>, %arg4: memref<8x128xf32, #tpu.memory_space<vmem>>, %arg5: memref<1x8x128xf32, #tpu.memory_space<vmem>>, %arg6: memref<8x128xf32, #tpu.memory_space<vmem>>) attributes {dimension_semantics = [#tpu.dimension_semantics<parallel>, #tpu.dimension_semantics<parallel>], iteration_bounds = array<i64: 1, 2>, scalar_prefetch = 1 : i64, scratch_operands = 1 : i64, tpu.core_type = #tpu.core_type<tc>, window_params = [{pipeline_mode = #tpu.pipeline_mode<synchronous>, transform_indices = @transform_0, window_bounds = array<i64: 64, 128>}, {transform_indices = @transform_1, window_bounds = array<i64: 8, 128>}, {transform_indices = @transform_2, window_bounds = array<i64: 1, 8, 128>}]} {
    %c8_i32 = arith.constant 8 : i32
    %0 = arith.muli %arg1, %c8_i32 : i32
    %c8_i32_0 = arith.constant 8 : i32
    %1 = arith.muli %arg0, %c8_i32_0 : i32
    %2 = arith.addi %0, %1 : i32
    %c0_i32 = arith.constant 0 : i32
    %c1_i32 = arith.constant 1 : i32
    %3 = arith.muli %c0_i32, %c1_i32 : i32
    %c0_i32_1 = arith.constant 0 : i32
    %4 = arith.addi %c0_i32_1, %3 : i32
    %c8_i32_2 = arith.constant 8 : i32
    %5 = arith.muli %4, %c8_i32_2 : i32
    %6 = tpu.assume_multiple %5, 8 : i32
    %c0_i32_3 = arith.constant 0 : i32
    %7 = arith.addi %6, %c0_i32_3 : i32
    %8 = arith.addi %2, %7 : i32
    %9 = arith.index_cast %8 : i32 to index
    %10 = memref.load %arg2[%9] : memref<16xi32, #tpu.memory_space<smem>>
    %11 = arith.index_cast %10 : i32 to index
    %c0 = arith.constant 0 : index
    %12 = vector.load %arg3[%11, %c0] : memref<64x128xf32, #tpu.memory_space<vmem>>, vector<1x128xf32>
    %13 = arith.index_cast %7 : i32 to index
    %c0_4 = arith.constant 0 : index
    %14 = vector.load %arg6[%13, %c0_4] : memref<8x128xf32, #tpu.memory_space<vmem>>, vector<1x128xf32>
    tpu.vector_store %arg6[%13, %c0_4], %12 {strides = array<i32>} : memref<8x128xf32, #tpu.memory_space<vmem>>, vector<1x128xf32>,
    %c1_i32_5 = arith.constant 1 : i32
    %15 = arith.addi %6, %c1_i32_5 : i32
    %16 = arith.addi %2, %15 : i32
    %17 = arith.index_cast %16 : i32 to index
    %18 = memref.load %arg2[%17] : memref<16xi32, #tpu.memory_space<smem>>
    %19 = arith.index_cast %18 : i32 to index
    %c0_6 = arith.constant 0 : index
    %20 = vector.load %arg3[%19, %c0_6] : memref<64x128xf32, #tpu.memory_space<vmem>>, vector<1x128xf32>
    %21 = arith.index_cast %15 : i32 to index
    %c0_7 = arith.constant 0 : index
    %22 = vector.load %arg6[%21, %c0_7] : memref<8x128xf32, #tpu.memory_space<vmem>>, vector<1x128xf32>
    tpu.vector_store %arg6[%21, %c0_7], %20 {strides = array<i32>} : memref<8x128xf32, #tpu.memory_space<vmem>>, vector<1x128xf32>,
    %c2_i32 = arith.constant 2 : i32
    %23 = arith.addi %6, %c2_i32 : i32
    %24 = arith.addi %2, %23 : i32
    %25 = arith.index_cast %24 : i32 to index
    %26 = memref.load %arg2[%25] : memref<16xi32, #tpu.memory_space<smem>>
    %27 = arith.index_cast %26 : i32 to index
    %c0_8 = arith.constant 0 : index
    %28 = vector.load %arg3[%27, %c0_8] : memref<64x128xf32, #tpu.memory_space<vmem>>, vector<1x128xf32>
    %29 = arith.index_cast %23 : i32 to index
    %c0_9 = arith.constant 0 : index
    %30 = vector.load %arg6[%29, %c0_9] : memref<8x128xf32, #tpu.memory_space<vmem>>, vector<1x128xf32>
    tpu.vector_store %arg6[%29, %c0_9], %28 {strides = array<i32>} : memref<8x128xf32, #tpu.memory_space<vmem>>, vector<1x128xf32>,
    %c3_i32 = arith.constant 3 : i32
    %31 = arith.addi %6, %c3_i32 : i32
    %32 = arith.addi %2, %31 : i32
    %33 = arith.index_cast %32 : i32 to index
    %34 = memref.load %arg2[%33] : memref<16xi32, #tpu.memory_space<smem>>
    %35 = arith.index_cast %34 : i32 to index
    %c0_10 = arith.constant 0 : index
    %36 = vector.load %arg3[%35, %c0_10] : memref<64x128xf32, #tpu.memory_space<vmem>>, vector<1x128xf32>
    %37 = arith.index_cast %31 : i32 to index
    %c0_11 = arith.constant 0 : index
    %38 = vector.load %arg6[%37, %c0_11] : memref<8x128xf32, #tpu.memory_space<vmem>>, vector<1x128xf32>
    tpu.vector_store %arg6[%37, %c0_11], %36 {strides = array<i32>} : memref<8x128xf32, #tpu.memory_space<vmem>>, vector<1x128xf32>,
    %c4_i32 = arith.constant 4 : i32
    %39 = arith.addi %6, %c4_i32 : i32
    %40 = arith.addi %2, %39 : i32
    %41 = arith.index_cast %40 : i32 to index
    %42 = memref.load %arg2[%41] : memref<16xi32, #tpu.memory_space<smem>>
    %43 = arith.index_cast %42 : i32 to index
    %c0_12 = arith.constant 0 : index
    %44 = vector.load %arg3[%43, %c0_12] : memref<64x128xf32, #tpu.memory_space<vmem>>, vector<1x128xf32>
    %45 = arith.index_cast %39 : i32 to index
    %c0_13 = arith.constant 0 : index
    %46 = vector.load %arg6[%45, %c0_13] : memref<8x128xf32, #tpu.memory_space<vmem>>, vector<1x128xf32>
    tpu.vector_store %arg6[%45, %c0_13], %44 {strides = array<i32>} : memref<8x128xf32, #tpu.memory_space<vmem>>, vector<1x128xf32>,
    %c5_i32 = arith.constant 5 : i32
    %47 = arith.addi %6, %c5_i32 : i32
    %48 = arith.addi %2, %47 : i32
    %49 = arith.index_cast %48 : i32 to index
    %50 = memref.load %arg2[%49] : memref<16xi32, #tpu.memory_space<smem>>
    %51 = arith.index_cast %50 : i32 to index
    %c0_14 = arith.constant 0 : index
    %52 = vector.load %arg3[%51, %c0_14] : memref<64x128xf32, #tpu.memory_space<vmem>>, vector<1x128xf32>
    %53 = arith.index_cast %47 : i32 to index
    %c0_15 = arith.constant 0 : index
    %54 = vector.load %arg6[%53, %c0_15] : memref<8x128xf32, #tpu.memory_space<vmem>>, vector<1x128xf32>
    tpu.vector_store %arg6[%53, %c0_15], %52 {strides = array<i32>} : memref<8x128xf32, #tpu.memory_space<vmem>>, vector<1x128xf32>,
    %c6_i32 = arith.constant 6 : i32
    %55 = arith.addi %6, %c6_i32 : i32
    %56 = arith.addi %2, %55 : i32
    %57 = arith.index_cast %56 : i32 to index
    %58 = memref.load %arg2[%57] : memref<16xi32, #tpu.memory_space<smem>>
    %59 = arith.index_cast %58 : i32 to index
    %c0_16 = arith.constant 0 : index
    %60 = vector.load %arg3[%59, %c0_16] : memref<64x128xf32, #tpu.memory_space<vmem>>, vector<1x128xf32>
    %61 = arith.index_cast %55 : i32 to index
    %c0_17 = arith.constant 0 : index
    %62 = vector.load %arg6[%61, %c0_17] : memref<8x128xf32, #tpu.memory_space<vmem>>, vector<1x128xf32>
    tpu.vector_store %arg6[%61, %c0_17], %60 {strides = array<i32>} : memref<8x128xf32, #tpu.memory_space<vmem>>, vector<1x128xf32>,
    %c7_i32 = arith.constant 7 : i32
    %63 = arith.addi %6, %c7_i32 : i32
    %64 = arith.addi %2, %63 : i32
    %65 = arith.index_cast %64 : i32 to index
    %66 = memref.load %arg2[%65] : memref<16xi32, #tpu.memory_space<smem>>
    %67 = arith.index_cast %66 : i32 to index
    %c0_18 = arith.constant 0 : index
    %68 = vector.load %arg3[%67, %c0_18] : memref<64x128xf32, #tpu.memory_space<vmem>>, vector<1x128xf32>
    %69 = arith.index_cast %63 : i32 to index
    %c0_19 = arith.constant 0 : index
    %70 = vector.load %arg6[%69, %c0_19] : memref<8x128xf32, #tpu.memory_space<vmem>>, vector<1x128xf32>
    tpu.vector_store %arg6[%69, %c0_19], %68 {strides = array<i32>} : memref<8x128xf32, #tpu.memory_space<vmem>>, vector<1x128xf32>,
    %c1_i32_20 = arith.constant 1 : i32
    %c0_21 = arith.constant 0 : index
    %c0_22 = arith.constant 0 : index
    %71 = vector.load %arg6[%c0_21, %c0_22] : memref<8x128xf32, #tpu.memory_space<vmem>>, vector<8x128xf32>
    %cst = arith.constant 11.3137083 : f32
    %72 = vector.broadcast %cst : f32 to vector<8x128xf32>
    %73 = arith.mulf %71, %72 : vector<8x128xf32>
    %c0_23 = arith.constant 0 : index
    %c0_24 = arith.constant 0 : index
    %74 = vector.load %arg4[%c0_23, %c0_24] : memref<8x128xf32, #tpu.memory_space<vmem>>, vector<8x128xf32>
    %75 = arith.addf %73, %74 : vector<8x128xf32>
    %c0_25 = arith.constant 0 : index
    %c0_26 = arith.constant 0 : index
    %c0_27 = arith.constant 0 : index
    %76 = vector.load %arg5[%c0_25, %c0_26, %c0_27] : memref<1x8x128xf32, #tpu.memory_space<vmem>>, vector<1x8x128xf32>
    %77 = vector.shape_cast %76 : vector<1x8x128xf32> to vector<8x128xf32>
    %78 = vector.shape_cast %75 : vector<8x128xf32> to vector<1x8x128xf32>
    tpu.vector_store %arg5[%c0_25, %c0_26, %c0_27], %78 {strides = array<i32>} : memref<1x8x128xf32, #tpu.memory_space<vmem>>, vector<1x8x128xf32>,
    return
  }
  func.func @transform_0(%arg0: i32, %arg1: i32, %arg2: memref<16xi32, #tpu.memory_space<smem>>) -> (i32, i32) {
    %c0_i32 = arith.constant 0 : i32
    %c0_i32_0 = arith.constant 0 : i32
    %c0_i32_1 = arith.constant 0 : i32
    return %c0_i32, %c0_i32_0 : i32, i32
  }
  func.func @transform_1(%arg0: i32, %arg1: i32, %arg2: memref<16xi32, #tpu.memory_space<smem>>) -> (i32, i32) {
    %c0_i32 = arith.constant 0 : i32
    %c0_i32_0 = arith.constant 0 : i32
    return %arg0, %c0_i32 : i32, i32
  }
  func.func @transform_2(%arg0: i32, %arg1: i32, %arg2: memref<16xi32, #tpu.memory_space<smem>>) -> (i32, i32, i32) {
    %c0_i32 = arith.constant 0 : i32
    %c0_i32_0 = arith.constant 0 : i32
    return %arg1, %arg0, %c0_i32 : i32, i32, i32
  }
}

</mosaic_0001>

<llo_original>
// kernel: tpu_custom_call.1
$region0: #{tpu_custom_call.1}
  #allocation0 [shape = 'u32[]', space=smem, size = 0x4, offset = 0x4, fixed_abs, tag = 'smem constant byte address 0x4 - core index']
  #allocation1 [shape = 'u32[144,128]{1,0:T(1,128)}', space=vmem, size = 0x12000, scoped, tag = 'internal scratch']
  #allocation2 [shape = 'f32[8,128]{1,0:T(8,128)}', space=vmem, size = 0x1000, scoped, tag = 'scratch operand']
  #allocation3 [shape = 's32[1]{0}', space=sflag, size = 0x4, scoped, tag = 'scoped memory for tpu_custom_call.1']
  #allocation4 [shape = 'u8[512]{0}', space=smem, size = 0x200, scoped, tag = 'prefetched SMEM operand 0']
  %s0 = inlined_call_operand.hbm [shape: s32[16], index: 0, kind: input, shape index: {}]
  %s1 = inlined_call_operand.hbm [shape: f32[64,128], index: 1, kind: input, shape index: {}]
  %s2 = inlined_call_operand.hbm [shape: f32[8,128], index: 2, kind: input, shape index: {}]
  %s3 = inlined_call_operand.hbm [shape: f32[2,8,128], index: 3, kind: output, shape index: {}]
  %s4 = sld [smem:[#allocation0]]
  $region49: #{tpu_custom_call.1} parent=0
    _
  %s6 = ssub.s32 1, %s4
  %s7 = scalar_select 0, %s6, %s4
  %9 = dma.hbm_to_smem %s0, 16, [#allocation4], [#allocation3]
  %10 = dma.done [#allocation3], 16
  %11 = sfence
  $region1: #{tpu_custom_call.1} parent=0
    #allocation5 [shape = 'u8[32768]{0}', space=vmem, size = 0x8000, scoped, tag = 'input window, operand 1, single buffered']
    #allocation6 [shape = 's32[2]{0}', space=sflag, size = 0x8, scoped, tag = 'scoped memory for tpu_custom_call.1']
    #allocation7 [shape = 's32[2]{0}', space=sflag, size = 0x8, scoped, tag = 'scoped memory for tpu_custom_call.1']
    #allocation8 [shape = 'u8[4096]{0}', space=vmem, size = 0x1000, scoped, tag = 'input window, operand 2, single buffered']
    #allocation9 [shape = 's32[1]{0}', space=sflag, size = 0x4, scoped, tag = 'scoped memory for tpu_custom_call.1']
    #allocation10 [shape = 'u8[8192]{0}', space=vmem, size = 0x2000, scoped, tag = 'output window, operand 0']
    %12 = vsyncpa [#allocation6], 0
    %13 = vsyncpa [#allocation9], 0
    %14 = vsyncpa [#allocation7], 0
    %s15 = scalar_lea.sflag [#allocation7], 1
    %16 = vsyncpa %s15, 0
    loop: start=0, step=1, limit=4
    $region2: #{tpu_custom_call.1} parent=1 // loop_pre_header
      _
    $region3: #{tpu_custom_call.1} parent=1 // loop_header
      %s18 = sphi 0, %s22
      %p19 = scmp.ge.s32.totalorder %s18, 4
      %s25 = sphi 0, %s37
      %s26 = sphi 0, %s33
      %s27 = sphi 0, %s25
      %s28 = sphi 0, %s26
      %s29 = sphi 0, %s27
      %s30 = sphi 0, %s28
      %s38 = sphi 0, %s38
      %s40 = sphi 0, %s38
      %s41 = sphi 0, %s40
      %s55 = sphi 0, %s41
      %s61 = sphi 0, %s63
      %s64 = sphi 0, %s61
      %s65 = sphi 0, %s64
      %s81 = sphi 0, %s65
      %s89 = sphi 0, %s91
      %s92 = sphi 0, %s89
      %s93 = sphi 0, %s92
      %s109 = sphi 0, %s93
    $region4: #{tpu_custom_call.1} parent=1 // loop_header_branch
      %21 = sbr.rel (%p19) target = $region8
    $region5: #{tpu_custom_call.1} parent=1 // loop_body
      %s23 = ssub.s32 %s18, 1
      %s24 = ssub.s32 %s18, 2
      %s31 = sadd.s32 1, %s26
      %p32 = scmp.ge.s32.totalorder %s31, 2
      %s33 = scalar_select %p32, 0, %s31
      %s34 = sadd.s32 1, %s25
      %s35 = scalar_select %p32, %s34, %s25
      %p36 = scmp.ge.s32.totalorder %s35, 1
      %s37 = scalar_select %p36, 0, %s35
      %s39 = sadd.s32 %s38, 1
      %p42 = scmp.eq.s32.totalorder %s18, 1
      %p43 = scmp.ne.s32.totalorder %s38, %s40
      %p44 = scmp.eq.s32.totalorder %s18, 0
      %p45 = por %p43, %p44
      %p46 = scmp.ne.s32.totalorder %s38, %s40
      %p47 = scmp.eq.s32.totalorder %s23, 1
      %p48 = por %p46, %p47
      %p49 = scmp.ne.s32.totalorder %s40, %s41
      %p50 = scmp.eq.s32.totalorder %s23, 0
      %p51 = por %p49, %p50
      %p52 = scmp.ne.s32.totalorder %s40, %s41
      %p53 = scmp.eq.s32.totalorder %s24, 1
      %p54 = por %p52, %p53
      %p56 = scmp.ne.s32.totalorder %s41, %s55
      %p57 = scmp.eq.s32.totalorder %s24, 0
      %p58 = por %p56, %p57
      %s59 = ssub.s32 %s25, %s37
      %p60 = scmp.eq.s32.totalorder %s59, 0
      %s62 = sadd.s32 %s61, 1
      %s63 = scalar_select %p60, %s61, %s62
      %p66 = pneg %p60
      %p67 = scmp.eq.s32.totalorder %s18, 1
      %p68 = por %p66, %p67
      %p69 = scmp.ne.s32.totalorder %s61, %s64
      %p70 = scmp.eq.s32.totalorder %s18, 0
      %p71 = por %p69, %p70
      %p72 = scmp.ne.s32.totalorder %s61, %s64
      %p73 = scmp.eq.s32.totalorder %s23, 1
      %p74 = por %p72, %p73
      %p75 = scmp.ne.s32.totalorder %s64, %s65
      %p76 = scmp.eq.s32.totalorder %s23, 0
      %p77 = por %p75, %p76
      %p78 = scmp.ne.s32.totalorder %s64, %s65
      %p79 = scmp.eq.s32.totalorder %s24, 1
      %p80 = por %p78, %p79
      %p82 = scmp.ne.s32.totalorder %s65, %s81
      %p83 = scmp.eq.s32.totalorder %s24, 0
      %p84 = por %p82, %p83
      %s85 = ssub.s32 %s26, %s33
      %s86 = ssub.s32 %s25, %s37
      %s87 = sor.u32 %s85, %s86
      %p88 = scmp.eq.s32.totalorder %s87, 0
      %s90 = sadd.s32 %s89, 1
      %s91 = scalar_select %p88, %s89, %s90
      %p94 = pneg %p88
      %p95 = scmp.eq.s32.totalorder %s18, 1
      %p96 = por %p94, %p95
      %p97 = scmp.ne.s32.totalorder %s89, %s92
      %p98 = scmp.eq.s32.totalorder %s18, 0
      %p99 = por %p97, %p98
      %p100 = scmp.ne.s32.totalorder %s89, %s92
      %p101 = scmp.eq.s32.totalorder %s23, 1
      %p102 = por %p100, %p101
      %p103 = scmp.ne.s32.totalorder %s92, %s93
      %p104 = scmp.eq.s32.totalorder %s23, 0
      %p105 = por %p103, %p104
      %p106 = scmp.ne.s32.totalorder %s92, %s93
      %p107 = scmp.eq.s32.totalorder %s24, 1
      %p108 = por %p106, %p107
      %p110 = scmp.ne.s32.totalorder %s93, %s109
      %p111 = scmp.eq.s32.totalorder %s24, 0
      %p112 = por %p110, %p111
      %p113 = scmp.le.s32.totalorder 1, %s18
      %p114 = scmp.lt.s32.totalorder %s18, 3
      %p115 = pnand %p113, %p114
      %p116 = pneg %p115
      // Predicated region
      $region9: #{tpu_custom_call.1} parent=5 // pred_check
        _
      $region10: #{tpu_custom_call.1} parent=5 // pred_check_branch
        %118 = sbr.rel (%p115) target = $region12
      $region11: #{tpu_custom_call.1} parent=5 // pred_region
        %s119 = ssub.s32 %s18, 1
        // Predicated region
        $region13: #{tpu_custom_call.1} parent=11 // pred_check
          %p120 = pneg %p51
        $region14: #{tpu_custom_call.1} parent=11 // pred_check_branch
          %122 = sbr.rel (%p120) target = $region16
        $region15: #{tpu_custom_call.1} parent=11 // pred_region
          %s124 = ssub.s32 1024, 1024
          %125 = vsyncadd [#allocation6], %s124
          %s126 = sshll.u32 [#allocation5], 4
          %s127 = int_to_ptr.vmem [resolvable:$true] %s126
          %132 = dma.hbm_to_vmem [thread:$0]  %s1, 1024, %s127, [#allocation6], 128, 128, 8
        $region16: #{tpu_custom_call.1} parent=11 // pred_fallthru
          _
        // Predicated region
        $region17: #{tpu_custom_call.1} parent=11 // pred_check
          %p133 = pneg %p77
        $region18: #{tpu_custom_call.1} parent=11 // pred_check_branch
          %135 = sbr.rel (%p133) target = $region20
        $region19: #{tpu_custom_call.1} parent=11 // pred_region
          %s137 = ssub.s32 128, 128
          %138 = vsyncadd [#allocation9], %s137
          %s139 = smul.addr %s27, 128
          %s140 = scalar_lea.hbm %s2, %s139
          %s142 = sshll.u32 [#allocation8], 4
          %s143 = int_to_ptr.vmem [resolvable:$true] %s142
          %145 = dma.hbm_to_vmem [thread:$0]  %s140, 128, %s143, [#allocation9]
        $region20: #{tpu_custom_call.1} parent=11 // pred_fallthru
          _
      $region12: #{tpu_custom_call.1} parent=5 // pred_fallthru
        _
      %p146 = scmp.lt.s32.totalorder %s18, 2
      // Predicated region
      $region21: #{tpu_custom_call.1} parent=5 // pred_check
        %p147 = pneg %p146
      $region22: #{tpu_custom_call.1} parent=5 // pred_check_branch
        %149 = sbr.rel (%p147) target = $region24
      $region23: #{tpu_custom_call.1} parent=5 // pred_region
        _
      $region24: #{tpu_custom_call.1} parent=5 // pred_fallthru
        _
      %p150 = scmp.le.s32.totalorder 1, %s18
      %p151 = scmp.lt.s32.totalorder %s18, 3
      %p152 = pnand %p150, %p151
      %p153 = pneg %p152
      // Predicated region
      $region25: #{tpu_custom_call.1} parent=5 // pred_check
        _
      $region26: #{tpu_custom_call.1} parent=5 // pred_check_branch
        %155 = sbr.rel (%p152) target = $region28
      $region27: #{tpu_custom_call.1} parent=5 // pred_region
        %s156 = ssub.s32 %s18, 1
        // Predicated region
        $region29: #{tpu_custom_call.1} parent=27 // pred_check
          %p157 = pneg %p51
        $region30: #{tpu_custom_call.1} parent=27 // pred_check_branch
          %159 = sbr.rel (%p157) target = $region32
        $region31: #{tpu_custom_call.1} parent=27 // pred_region
          %160 = dma.done [#allocation6], 1024
        $region32: #{tpu_custom_call.1} parent=27 // pred_fallthru
          _
        // Predicated region
        $region33: #{tpu_custom_call.1} parent=27 // pred_check
          %p161 = pneg %p77
        $region34: #{tpu_custom_call.1} parent=27 // pred_check_branch
          %163 = sbr.rel (%p161) target = $region36
        $region35: #{tpu_custom_call.1} parent=27 // pred_region
          %164 = dma.done [#allocation9], 128
        $region36: #{tpu_custom_call.1} parent=27 // pred_fallthru
          _
        %p165 = pneg %p51
        %p166 = pneg %p48
        %p167 = pneg %p77
        %p168 = pneg %p74
        %p169 = pneg %p105
        %p170 = pneg %p102
        %s171 = sand.u32 %s92, 1
        %s172 = scalar_lea.sflag [#allocation7], %s171
        %s173 = sand.u32 %s92, 1
        %s174 = smul.addr %s173, 8
        %s175 = scalar_lea.vmem [#allocation10], %s174
        %s176 = smul.u32 %s28, 8
        %s177 = smul.u32 %s27, 8
        %s178 = sadd.s32 %s176, %s177
        %s179 = sadd.s32 %s178, 0
        %s180 = sld [smem:[#allocation4 + %s179]]
        %s181 = scalar_lea.vmem [#allocation5], %s180
        %v182 = vld [vmem:[%s181] sm:$0x1]
        %183 = vst [vmem:[#allocation2] sm:$0x1] %v182
        %s184 = sadd.s32 0, 1
        %s185 = sadd.s32 %s178, %s184
        %s186 = sld [smem:[#allocation4 + %s185]]
        %s187 = scalar_lea.vmem [#allocation5], %s186
        %v188 = vld [vmem:[%s187] sm:$0x1]
        %s189 = scalar_lea.vmem [#allocation2], %s184
        %190 = vst [vmem:[%s189] sm:$0x1] %v188
        %s191 = sadd.s32 0, 2
        %s192 = sadd.s32 %s178, %s191
        %s193 = sld [smem:[#allocation4 + %s192]]
        %s194 = scalar_lea.vmem [#allocation5], %s193
        %v195 = vld [vmem:[%s194] sm:$0x1]
        %s196 = scalar_lea.vmem [#allocation2], %s191
        %197 = vst [vmem:[%s196] sm:$0x1] %v195
        %s198 = sadd.s32 0, 3
        %s199 = sadd.s32 %s178, %s198
        %s200 = sld [smem:[#allocation4 + %s199]]
        %s201 = scalar_lea.vmem [#allocation5], %s200
        %v202 = vld [vmem:[%s201] sm:$0x1]
        %s203 = scalar_lea.vmem [#allocation2], %s198
        %204 = vst [vmem:[%s203] sm:$0x1] %v202
        %s205 = sadd.s32 0, 4
        %s206 = sadd.s32 %s178, %s205
        %s207 = sld [smem:[#allocation4 + %s206]]
        %s208 = scalar_lea.vmem [#allocation5], %s207
        %v209 = vld [vmem:[%s208] sm:$0x1]
        %s210 = scalar_lea.vmem [#allocation2], %s205
        %211 = vst [vmem:[%s210] sm:$0x1] %v209
        %s212 = sadd.s32 0, 5
        %s213 = sadd.s32 %s178, %s212
        %s214 = sld [smem:[#allocation4 + %s213]]
        %s215 = scalar_lea.vmem [#allocation5], %s214
        %v216 = vld [vmem:[%s215] sm:$0x1]
        %s217 = scalar_lea.vmem [#allocation2], %s212
        %218 = vst [vmem:[%s217] sm:$0x1] %v216
        %s219 = sadd.s32 0, 6
        %s220 = sadd.s32 %s178, %s219
        %s221 = sld [smem:[#allocation4 + %s220]]
        %s222 = scalar_lea.vmem [#allocation5], %s221
        %v223 = vld [vmem:[%s222] sm:$0x1]
        %s224 = scalar_lea.vmem [#allocation2], %s219
        %225 = vst [vmem:[%s224] sm:$0x1] %v223
        %s226 = sadd.s32 0, 7
        %s227 = sadd.s32 %s178, %s226
        %s228 = sld [smem:[#allocation4 + %s227]]
        %s229 = scalar_lea.vmem [#allocation5], %s228
        %v230 = vld [vmem:[%s229] sm:$0x1]
        %s231 = scalar_lea.vmem [#allocation2], %s226
        %232 = vst [vmem:[%s231] sm:$0x1] %v230
        %v233 = vld [vmem:[#allocation2] sm:$0xff]
        %v234 = vmul.f32 %v233, 11.313708
        %v235 = vld [vmem:[#allocation8] sm:$0xff]
        %v236 = vadd.f32 %v234, %v235
        %237 = vst [vmem:[%s175] sm:$0xff] %v236
        %s238 = sand.u32 %s92, 1
        %s239 = scalar_lea.sflag [#allocation7], %s238
        %s240 = sand.u32 %s92, 1
        %s241 = smul.addr %s240, 8
        %s242 = scalar_lea.vmem [#allocation10], %s241
        // Predicated region
        $region37: #{tpu_custom_call.1} parent=27 // pred_check
          %p243 = pneg %p102
        $region38: #{tpu_custom_call.1} parent=27 // pred_check_branch
          %245 = sbr.rel (%p243) target = $region40
        $region39: #{tpu_custom_call.1} parent=27 // pred_region
          %s247 = ssub.s32 128, 128
          %248 = vsyncadd %s239, %s247
          %s249 = sadd.s32 %s27, %s28
          %s250 = smul.addr %s249, 128
          %s251 = scalar_lea.hbm %s3, %s250
          %s253 = sshll.u32 %s242, 4
          %s254 = int_to_ptr.vmem [resolvable:$true] %s253
          %256 = dma.vmem_to_hbm [thread:$0]  %s254, 128, %s251, %s239
        $region40: #{tpu_custom_call.1} parent=27 // pred_fallthru
          _
      $region28: #{tpu_custom_call.1} parent=5 // pred_fallthru
        _
      %p257 = scmp.le.s32.totalorder 2, %s18
      // Predicated region
      $region41: #{tpu_custom_call.1} parent=5 // pred_check
        %p258 = pneg %p257
      $region42: #{tpu_custom_call.1} parent=5 // pred_check_branch
        %260 = sbr.rel (%p258) target = $region44
      $region43: #{tpu_custom_call.1} parent=5 // pred_region
        %s261 = ssub.s32 %s18, 2
        // Predicated region
        $region45: #{tpu_custom_call.1} parent=43 // pred_check
          %p262 = pneg %p108
        $region46: #{tpu_custom_call.1} parent=43 // pred_check_branch
          %264 = sbr.rel (%p262) target = $region48
        $region47: #{tpu_custom_call.1} parent=43 // pred_region
          %s265 = sand.u32 %s93, 1
          %s266 = scalar_lea.sflag [#allocation7], %s265
          %s267 = sand.u32 %s93, 1
          %s268 = smul.addr %s267, 8
          %s269 = scalar_lea.vmem [#allocation10], %s268
          %270 = dma.done %s266, 128
        $region48: #{tpu_custom_call.1} parent=43 // pred_fallthru
          _
      $region44: #{tpu_custom_call.1} parent=5 // pred_fallthru
        _
    $region6: #{tpu_custom_call.1} parent=1 // loop_footer
      %s22 = sadd.s32 1, %s18
    $region7: #{tpu_custom_call.1} parent=1 // loop_footer_branch
      %17 = sbr.rel target = $region3
    $region8: #{tpu_custom_call.1} parent=1 // loop_exit
      _
    %271 = vsyncpa [#allocation6], 1
    %s272 = scalar_lea.sflag [#allocation6], 1
    %273 = vsyncpa %s272, 1
    %274 = vsyncpa [#allocation9], 1
    %275 = vsyncpa [#allocation7], 1
    %s276 = scalar_lea.sflag [#allocation7], 1
    %277 = vsyncpa %s276, 1

</llo_original>
